<compile_context>
chip_gen: v6e
topology: v6e:2x2x1
jax: 0.10.0
libtpu: 0.0.40
codegen_flags: <defaults>
</compile_context>

<pallas_src>
import functools

import jax
import jax.numpy as jnp
from jax.experimental import pallas as pl
from jax.experimental.pallas import tpu as pltpu


# ---------------------------------------------------------------------------
# Pass 1: channel-mean squared error, (1, C, TR, 128) -> (1, TR, 128) per tile.
# ---------------------------------------------------------------------------
def _mean_sq_err_kernel(pred_ref, tgt_ref, out_ref, *, inv_c):
    p = pred_ref[...].astype(jnp.float32)        # (1, C, TR, 128)
    t = tgt_ref[...].astype(jnp.float32)
    d = p - t
    # Channel mean = sum over the (leading, untiled) C axis, then one multiply
    # by the precomputed 1/C instead of a per-element divide.
    out_ref[...] = jnp.sum(d * d, axis=1) * jnp.float32(inv_c)   # (1, TR, 128)


# ---------------------------------------------------------------------------
# Pass 2: exact lower median of the non-negative (B, R, 128) f32 buffer.
# Returns the int32 bit pattern of the median (bit-cast to f32 in the wrapper).
# ---------------------------------------------------------------------------
def _median_select_kernel(err_ref, out_ref, *, hw_valid, target):
    x = err_ref[...]                                        # (B, R, 128), x >= 0
    row = jax.lax.broadcasted_iota(jnp.int32, x.shape, 1)
    lane = jax.lax.broadcasted_iota(jnp.int32, x.shape, 2)
    valid = row * 128 + lane < hw_valid                     # same pad per batch

    # Bit pattern of a non-negative finite f32 is monotone in its value.
    xi = pltpu.bitcast(x, jnp.int32)
    xi = jnp.where(valid, xi, jnp.int32(0x7FFFFFFF))        # pads sort last
    # TODO(synk): NaN mean-errors (bits > 0x7F800000) sort past +inf and can
    # never be selected, so a NaN median diverges from the PyTorch reference.

    def body(_, carry):
        lo, hi = carry
        mid = lo + (hi - lo) // 2
        cnt = jnp.sum((xi <= mid).astype(jnp.int32))        # exact rank count
        ge = cnt >= target
        return jnp.where(ge, lo, mid + 1), jnp.where(ge, mid, hi)

    # 31 halvings collapse [0, 0x7F800000] to a single value: the exact bit
    # pattern of the target-th smallest valid element.  Unrolled so the LLO
    # scheduler can overlap the serial cross-lane reduce latency.
    _, hi = jax.lax.fori_loop(
        0, 31, body, (jnp.int32(0), jnp.int32(0x7F800000)), unroll=True)
    out_ref[0, 0] = hi


# ---------------------------------------------------------------------------
# Tiling choice
# ---------------------------------------------------------------------------
def _pick_row_tiling(rows, c, batch, budget_bytes=2 << 20):
    """Return (tile_rows, rows_pad) for pass-1 blocks of (1, C, tile_rows, 128).

    Per-input block bytes (f32) = C * align8(tile_rows) * 128 * 4; kept under
    `budget_bytes` so the double-buffered pipeline fits comfortably inside
    v5e's 16 MiB default scoped VMEM (and v7x's 64 MiB physical VMEM).
    tile_rows is either a multiple of 8 or the full row extent, as required by
    the (8, 128) block constraint.  Prefers divisors of `rows` so no padding
    (and hence no extra HBM copy) is needed.
    """
    max_rows = max(8, (budget_bytes // (c * 512)) // 8 * 8)
    if batch == 1 and rows >= 16:
        # v7x megacore: give the row grid >= 2 steps when the batch axis
        # provides no parallelism.
        max_rows = min(max_rows, ((rows + 1) // 2 + 7) // 8 * 8)
    if rows <= max_rows:
        return rows, rows
    # Largest multiple-of-8 divisor of `rows` under the budget -> pad-free.
    t = max_rows
    while t > 8 and rows % t != 0:
        t -= 8
    if rows % t == 0:
        return t, rows
    # No pad-free tiling: pad the row axis up to a multiple of max_rows.
    return max_rows, pl.cdiv(rows, max_rows) * max_rows


# ---------------------------------------------------------------------------
# Wrapper
# ---------------------------------------------------------------------------
def median_squared_error(predictions: jax.Array, targets: jax.Array) -> jax.Array:
    assert predictions.shape == targets.shape
    b, c, h, w = predictions.shape
    hw = h * w
    n = b * hw

    rows = pl.cdiv(hw, 128)
    tile_rows, rows_pad = _pick_row_tiling(rows, c, b)
    hw_pad = rows_pad * 128

    # TODO(synk): for bf16/f16 inputs, DMA the native dtype (halves HBM reads)
    # instead of upcasting here; kernel already upcasts internally.
    p = predictions.astype(jnp.float32).reshape(b, c, hw)
    t = targets.astype(jnp.float32).reshape(b, c, hw)
    if hw_pad != hw:
        # TODO(synk): a masked in-kernel tail would avoid this O(C*N) copy.
        pad = ((0, 0), (0, 0), (0, hw_pad - hw))
        p = jnp.pad(p, pad)
        t = jnp.pad(t, pad)
    # Free reshape (splits the trailing contiguous axis only).
    p = p.reshape(b, c, rows_pad, 128)
    t = t.reshape(b, c, rows_pad, 128)

    grid_rows = rows_pad // tile_rows
    grid = (b, grid_rows)

    rows_aligned = pl.cdiv(tile_rows, 8) * 8
    in_block_bytes = c * rows_aligned * 128 * 4
    out_block_bytes = rows_aligned * 128 * 4
    vmem_budget = 2 * 2 * in_block_bytes + 2 * out_block_bytes + (2 << 20)

    mean_err = pl.pallas_call(
        functools.partial(_mean_sq_err_kernel, inv_c=1.0 / c),
        out_shape=jax.ShapeDtypeStruct((b, rows_pad, 128), jnp.float32),
        grid=grid,
        in_specs=[
            pl.BlockSpec((1, c, tile_rows, 128), lambda bi, ri: (bi, 0, ri, 0)),
            pl.BlockSpec((1, c, tile_rows, 128), lambda bi, ri: (bi, 0, ri, 0)),
        ],
        out_specs=pl.BlockSpec((1, tile_rows, 128), lambda bi, ri: (bi, ri, 0)),
        compiler_params=pltpu.CompilerParams(
            dimension_semantics=("parallel", "parallel"),
            vmem_limit_bytes=int(max(vmem_budget, 16 << 20)),
        ),
        cost_estimate=pl.CostEstimate(
            flops=3 * c * b * hw_pad,
            transcendentals=0,
            bytes_accessed=(2 * c + 1) * b * hw_pad * 4,
        ),
    )(p, t)

    # Pass 2: exact lower-median selection (torch.median semantics).
    k = (n - 1) // 2
    err_bytes = b * rows_pad * 128 * 4
    vmem2 = int(min(max(6 * err_bytes + (2 << 20), 16 << 20), 128 << 20))
    # TODO(synk): if N grows so large that the dense (B, R, 128) intermediate
    # exceeds scoped VMEM (~6M elems on v7x), tile pass 2 over row blocks with
    # SMEM-carried (lo, hi, cnt) search state.
    med_bits = pl.pallas_call(
        functools.partial(_median_select_kernel, hw_valid=hw, target=k + 1),
        out_shape=jax.ShapeDtypeStruct((1, 1), jnp.int32),
        in_specs=[pl.BlockSpec(memory_space=pltpu.MemorySpace.VMEM)],
        out_specs=pl.BlockSpec(memory_space=pltpu.MemorySpace.VMEM),
        compiler_params=pltpu.CompilerParams(vmem_limit_bytes=vmem2),
    )(mean_err)

    return jax.lax.bitcast_convert_type(med_bits[0, 0], jnp.float32)


if __name__ == "__main__":
    key = jax.random.PRNGKey(0)
    k1, k2 = jax.random.split(key)
    shape = (2, 4, 16, 16)  # (batch, channels, H, W)
    predictions = jax.random.normal(k1, shape, dtype=jnp.float32)
    targets = jax.random.normal(k2, shape, dtype=jnp.float32)

    result = jax.block_until_ready(median_squared_error(predictions, targets))

    # Pure-JAX reference mirroring the PyTorch module (lower median).
    diff = (predictions - targets) ** 2
    mean_errors = diff.mean(axis=1).reshape(-1)
    kk = (mean_errors.shape[0] - 1) // 2
    expected = jnp.sort(mean_errors)[kk]

    assert abs(float(result) - float(expected)) <= 1e-6 * max(1.0, abs(float(expected))), (
        float(result),
        float(expected),
    )
    print("KERNEL_OK")
</pallas_src>

<mosaic_0001>
module attributes {stable_mosaic.version = 11 : i64} {
  func.func @_mean_sq_err_kernel(%arg0: i32, %arg1: i32, %arg2: memref<1x4x2x128xf32, #tpu.memory_space<vmem>>, %arg3: memref<1x4x2x128xf32, #tpu.memory_space<vmem>>, %arg4: memref<1x2x128xf32, #tpu.memory_space<vmem>>) attributes {dimension_semantics = [#tpu.dimension_semantics<parallel>, #tpu.dimension_semantics<parallel>], iteration_bounds = array<i64: 2, 1>, scalar_prefetch = 0 : i64, scratch_operands = 0 : i64, tpu.core_type = #tpu.core_type<tc>, window_params = [{transform_indices = @transform_0, window_bounds = array<i64: 1, 4, 2, 128>}, {transform_indices = @transform_1, window_bounds = array<i64: 1, 4, 2, 128>}, {transform_indices = @transform_2, window_bounds = array<i64: 1, 2, 128>}]} {
    %c0 = arith.constant 0 : index
    %c0_0 = arith.constant 0 : index
    %c0_1 = arith.constant 0 : index
    %c0_2 = arith.constant 0 : index
    %0 = vector.load %arg2[%c0, %c0_0, %c0_1, %c0_2] : memref<1x4x2x128xf32, #tpu.memory_space<vmem>>, vector<1x4x2x128xf32>
    %c0_3 = arith.constant 0 : index
    %c0_4 = arith.constant 0 : index
    %c0_5 = arith.constant 0 : index
    %c0_6 = arith.constant 0 : index
    %1 = vector.load %arg3[%c0_3, %c0_4, %c0_5, %c0_6] : memref<1x4x2x128xf32, #tpu.memory_space<vmem>>, vector<1x4x2x128xf32>
    %2 = arith.subf %0, %1 : vector<1x4x2x128xf32>
    %3 = arith.mulf %2, %2 : vector<1x4x2x128xf32>
    %cst = arith.constant dense<0.000000e+00> : vector<1x2x128xf32>
    %4 = vector.multi_reduction <add>, %3, %cst [1] : vector<1x4x2x128xf32> to vector<1x2x128xf32>
    %cst_7 = arith.constant 2.500000e-01 : f32
    %5 = vector.broadcast %cst_7 : f32 to vector<1x2x128xf32>
    %6 = arith.mulf %4, %5 : vector<1x2x128xf32>
    %c0_8 = arith.constant 0 : index
    %c0_9 = arith.constant 0 : index
    %c0_10 = arith.constant 0 : index
    %7 = vector.load %arg4[%c0_8, %c0_9, %c0_10] : memref<1x2x128xf32, #tpu.memory_space<vmem>>, vector<1x2x128xf32>
    tpu.vector_store %arg4[%c0_8, %c0_9, %c0_10], %6 {strides = array<i32>} : memref<1x2x128xf32, #tpu.memory_space<vmem>>, vector<1x2x128xf32>,
    return
  }
  func.func @transform_0(%arg0: i32, %arg1: i32) -> (i32, i32, i32, i32) {
    %c0_i32 = arith.constant 0 : i32
    %c0_i32_0 = arith.constant 0 : i32
    %c0_i32_1 = arith.constant 0 : i32
    return %arg0, %c0_i32, %arg1, %c0_i32_0 : i32, i32, i32, i32
  }
  func.func @transform_1(%arg0: i32, %arg1: i32) -> (i32, i32, i32, i32) {
    %c0_i32 = arith.constant 0 : i32
    %c0_i32_0 = arith.constant 0 : i32
    %c0_i32_1 = arith.constant 0 : i32
    return %arg0, %c0_i32, %arg1, %c0_i32_0 : i32, i32, i32, i32
  }
  func.func @transform_2(%arg0: i32, %arg1: i32) -> (i32, i32, i32) {
    %c0_i32 = arith.constant 0 : i32
    %c0_i32_0 = arith.constant 0 : i32
    return %arg0, %arg1, %c0_i32 : i32, i32, i32
  }
}

</mosaic_0001>

<llo_original>
// kernel: tpu_custom_call.1
$region0: #{tpu_custom_call.1}
  #allocation0 [shape = 'u32[]', space=smem, size = 0x4, offset = 0x4, fixed_abs, tag = 'smem constant byte address 0x4 - core index']
  #allocation1 [shape = 'u32[144,128]{1,0:T(1,128)}', space=vmem, size = 0x12000, scoped, tag = 'internal scratch']
  %s0 = inlined_call_operand.hbm [shape: f32[2,4,2,128], index: 0, kind: input, shape index: {}]
  %s1 = inlined_call_operand.hbm [shape: f32[2,4,2,128], index: 1, kind: input, shape index: {}]
  %s2 = inlined_call_operand.hbm [shape: f32[2,2,128], index: 2, kind: output, shape index: {}]
  %s3 = sld [smem:[#allocation0]]
  $region49: #{tpu_custom_call.1} parent=0
    _
  %s5 = ssub.s32 1, %s3
  %s6 = scalar_select 0, %s5, %s3
  $region1: #{tpu_custom_call.1} parent=0
    #allocation2 [shape = 'u8[8192]{0}', space=vmem, size = 0x2000, scoped, tag = 'input window, operand 0']
    #allocation3 [shape = 's32[2]{0}', space=sflag, size = 0x8, scoped, tag = 'scoped memory for tpu_custom_call.1']
    #allocation4 [shape = 's32[2]{0}', space=sflag, size = 0x8, scoped, tag = 'scoped memory for tpu_custom_call.1']
    #allocation5 [shape = 'u8[8192]{0}', space=vmem, size = 0x2000, scoped, tag = 'input window, operand 1']
    #allocation6 [shape = 's32[2]{0}', space=sflag, size = 0x8, scoped, tag = 'scoped memory for tpu_custom_call.1']
    #allocation7 [shape = 'u8[2048]{0}', space=vmem, size = 0x800, scoped, tag = 'output window, operand 0']
    %7 = vsyncpa [#allocation3], 0
    %s8 = scalar_lea.sflag [#allocation3], 1
    %9 = vsyncpa %s8, 0
    %10 = vsyncpa [#allocation6], 0
    %s11 = scalar_lea.sflag [#allocation6], 1
    %12 = vsyncpa %s11, 0
    %13 = vsyncpa [#allocation4], 0
    %s14 = scalar_lea.sflag [#allocation4], 1
    %15 = vsyncpa %s14, 0
    loop: start=0, step=1, limit=4
    $region2: #{tpu_custom_call.1} parent=1 // loop_pre_header
      _
    $region3: #{tpu_custom_call.1} parent=1 // loop_header
      %s17 = sphi 0, %s21
      %p18 = scmp.ge.s32.totalorder %s17, 4
      %s24 = sphi 0, %s36
      %s25 = sphi 0, %s32
      %s26 = sphi 0, %s24
      %s27 = sphi 0, %s25
      %s28 = sphi 0, %s26
      %s29 = sphi 0, %s27
      %s41 = sphi 0, %s43
      %s44 = sphi 0, %s41
      %s45 = sphi 0, %s44
      %s61 = sphi 0, %s45
      %s69 = sphi 0, %s71
      %s72 = sphi 0, %s69
      %s73 = sphi 0, %s72
      %s89 = sphi 0, %s73
      %s97 = sphi 0, %s99
      %s100 = sphi 0, %s97
      %s101 = sphi 0, %s100
      %s117 = sphi 0, %s101
    $region4: #{tpu_custom_call.1} parent=1 // loop_header_branch
      %20 = sbr.rel (%p18) target = $region8
    $region5: #{tpu_custom_call.1} parent=1 // loop_body
      %s22 = ssub.s32 %s17, 1
      %s23 = ssub.s32 %s17, 2
      %s30 = sadd.s32 1, %s25
      %p31 = scmp.ge.s32.totalorder %s30, 1
      %s32 = scalar_select %p31, 0, %s30
      %s33 = sadd.s32 1, %s24
      %s34 = scalar_select %p31, %s33, %s24
      %p35 = scmp.ge.s32.totalorder %s34, 2
      %s36 = scalar_select %p35, 0, %s34
      %s37 = ssub.s32 %s24, %s36
      %s38 = ssub.s32 %s25, %s32
      %s39 = sor.u32 %s37, %s38
      %p40 = scmp.eq.s32.totalorder %s39, 0
      %s42 = sadd.s32 %s41, 1
      %s43 = scalar_select %p40, %s41, %s42
      %p46 = pneg %p40
      %p47 = scmp.eq.s32.totalorder %s17, 1
      %p48 = por %p46, %p47
      %p49 = scmp.ne.s32.totalorder %s41, %s44
      %p50 = scmp.eq.s32.totalorder %s17, 0
      %p51 = por %p49, %p50
      %p52 = scmp.ne.s32.totalorder %s41, %s44
      %p53 = scmp.eq.s32.totalorder %s22, 1
      %p54 = por %p52, %p53
      %p55 = scmp.ne.s32.totalorder %s44, %s45
      %p56 = scmp.eq.s32.totalorder %s22, 0
      %p57 = por %p55, %p56
      %p58 = scmp.ne.s32.totalorder %s44, %s45
      %p59 = scmp.eq.s32.totalorder %s23, 1
      %p60 = por %p58, %p59
      %p62 = scmp.ne.s32.totalorder %s45, %s61
      %p63 = scmp.eq.s32.totalorder %s23, 0
      %p64 = por %p62, %p63
      %s65 = ssub.s32 %s24, %s36
      %s66 = ssub.s32 %s25, %s32
      %s67 = sor.u32 %s65, %s66
      %p68 = scmp.eq.s32.totalorder %s67, 0
      %s70 = sadd.s32 %s69, 1
      %s71 = scalar_select %p68, %s69, %s70
      %p74 = pneg %p68
      %p75 = scmp.eq.s32.totalorder %s17, 1
      %p76 = por %p74, %p75
      %p77 = scmp.ne.s32.totalorder %s69, %s72
      %p78 = scmp.eq.s32.totalorder %s17, 0
      %p79 = por %p77, %p78
      %p80 = scmp.ne.s32.totalorder %s69, %s72
      %p81 = scmp.eq.s32.totalorder %s22, 1
      %p82 = por %p80, %p81
      %p83 = scmp.ne.s32.totalorder %s72, %s73
      %p84 = scmp.eq.s32.totalorder %s22, 0
      %p85 = por %p83, %p84
      %p86 = scmp.ne.s32.totalorder %s72, %s73
      %p87 = scmp.eq.s32.totalorder %s23, 1
      %p88 = por %p86, %p87
      %p90 = scmp.ne.s32.totalorder %s73, %s89
      %p91 = scmp.eq.s32.totalorder %s23, 0
      %p92 = por %p90, %p91
      %s93 = ssub.s32 %s24, %s36
      %s94 = ssub.s32 %s25, %s32
      %s95 = sor.u32 %s93, %s94
      %p96 = scmp.eq.s32.totalorder %s95, 0
      %s98 = sadd.s32 %s97, 1
      %s99 = scalar_select %p96, %s97, %s98
      %p102 = pneg %p96
      %p103 = scmp.eq.s32.totalorder %s17, 1
      %p104 = por %p102, %p103
      %p105 = scmp.ne.s32.totalorder %s97, %s100
      %p106 = scmp.eq.s32.totalorder %s17, 0
      %p107 = por %p105, %p106
      %p108 = scmp.ne.s32.totalorder %s97, %s100
      %p109 = scmp.eq.s32.totalorder %s22, 1
      %p110 = por %p108, %p109
      %p111 = scmp.ne.s32.totalorder %s100, %s101
      %p112 = scmp.eq.s32.totalorder %s22, 0
      %p113 = por %p111, %p112
      %p114 = scmp.ne.s32.totalorder %s100, %s101
      %p115 = scmp.eq.s32.totalorder %s23, 1
      %p116 = por %p114, %p115
      %p118 = scmp.ne.s32.totalorder %s101, %s117
      %p119 = scmp.eq.s32.totalorder %s23, 0
      %p120 = por %p118, %p119
      %p121 = scmp.le.s32.totalorder 1, %s17
      %p122 = scmp.lt.s32.totalorder %s17, 3
      %p123 = pnand %p121, %p122
      %p124 = pneg %p123
      // Predicated region
      $region9: #{tpu_custom_call.1} parent=5 // pred_check
        _
      $region10: #{tpu_custom_call.1} parent=5 // pred_check_branch
        %126 = sbr.rel (%p123) target = $region12
      $region11: #{tpu_custom_call.1} parent=5 // pred_region
        %s127 = ssub.s32 %s17, 1
      $region12: #{tpu_custom_call.1} parent=5 // pred_fallthru
        _
      %p128 = scmp.lt.s32.totalorder %s17, 2
      // Predicated region
      $region13: #{tpu_custom_call.1} parent=5 // pred_check
        %p129 = pneg %p128
      $region14: #{tpu_custom_call.1} parent=5 // pred_check_branch
        %131 = sbr.rel (%p129) target = $region16
      $region15: #{tpu_custom_call.1} parent=5 // pred_region
        // Predicated region
        $region17: #{tpu_custom_call.1} parent=15 // pred_check
          %p132 = pneg %p51
        $region18: #{tpu_custom_call.1} parent=15 // pred_check_branch
          %134 = sbr.rel (%p132) target = $region20
        $region19: #{tpu_custom_call.1} parent=15 // pred_region
          %s135 = sand.u32 %s41, 1
          %s136 = scalar_lea.sflag [#allocation3], %s135
          %s137 = sand.u32 %s41, 1
          %s138 = smul.addr %s137, 8
          %s139 = scalar_lea.vmem [#allocation2], %s138
          %s141 = ssub.s32 128, 128
          %142 = vsyncadd %s136, %s141
          %s143 = smul.addr %s24, 4
          %s144 = sadd.s32 %s25, %s143
          %s145 = smul.addr %s144, 32
          %s146 = scalar_lea.hbm %s0, %s145
          %s147 = sshll.u32 %s139, 4
          %s148 = int_to_ptr.vmem [resolvable:$true] %s147
          %153 = dma.hbm_to_vmem [thread:$0]  %s146, 128, %s148, %s136, 32, 32, 2
        $region20: #{tpu_custom_call.1} parent=15 // pred_fallthru
          _
        // Predicated region
        $region21: #{tpu_custom_call.1} parent=15 // pred_check
          %p154 = pneg %p79
        $region22: #{tpu_custom_call.1} parent=15 // pred_check_branch
          %156 = sbr.rel (%p154) target = $region24
        $region23: #{tpu_custom_call.1} parent=15 // pred_region
          %s157 = sand.u32 %s69, 1
          %s158 = scalar_lea.sflag [#allocation6], %s157
          %s159 = sand.u32 %s69, 1
          %s160 = smul.addr %s159, 8
          %s161 = scalar_lea.vmem [#allocation5], %s160
          %s163 = ssub.s32 128, 128
          %164 = vsyncadd %s158, %s163
          %s165 = smul.addr %s24, 4
          %s166 = sadd.s32 %s25, %s165
          %s167 = smul.addr %s166, 32
          %s168 = scalar_lea.hbm %s1, %s167
          %s169 = sshll.u32 %s161, 4
          %s170 = int_to_ptr.vmem [resolvable:$true] %s169
          %175 = dma.hbm_to_vmem [thread:$0]  %s168, 128, %s170, %s158, 32, 32, 2
        $region24: #{tpu_custom_call.1} parent=15 // pred_fallthru
          _
      $region16: #{tpu_custom_call.1} parent=5 // pred_fallthru
        _
      %p176 = scmp.le.s32.totalorder 1, %s17
      %p177 = scmp.lt.s32.totalorder %s17, 3
      %p178 = pnand %p176, %p177
      %p179 = pneg %p178
      // Predicated region
      $region25: #{tpu_custom_call.1} parent=5 // pred_check
        _
      $region26: #{tpu_custom_call.1} parent=5 // pred_check_branch
        %181 = sbr.rel (%p178) target = $region28
      $region27: #{tpu_custom_call.1} parent=5 // pred_region
        %s182 = ssub.s32 %s17, 1
        %s183 = sand.u32 %s44, 1
        %s184 = scalar_lea.sflag [#allocation3], %s183
        %s185 = sand.u32 %s44, 1
        %s186 = smul.addr %s185, 8
        %s187 = scalar_lea.vmem [#allocation2], %s186
        // Predicated region
        $region29: #{tpu_custom_call.1} parent=27 // pred_check
          %p188 = pneg %p57
        $region30: #{tpu_custom_call.1} parent=27 // pred_check_branch
          %190 = sbr.rel (%p188) target = $region32
        $region31: #{tpu_custom_call.1} parent=27 // pred_region
          %191 = dma.done %s184, 128
        $region32: #{tpu_custom_call.1} parent=27 // pred_fallthru
          _
        %s192 = sand.u32 %s72, 1
        %s193 = scalar_lea.sflag [#allocation6], %s192
        %s194 = sand.u32 %s72, 1
        %s195 = smul.addr %s194, 8
        %s196 = scalar_lea.vmem [#allocation5], %s195
        // Predicated region
        $region33: #{tpu_custom_call.1} parent=27 // pred_check
          %p197 = pneg %p85
        $region34: #{tpu_custom_call.1} parent=27 // pred_check_branch
          %199 = sbr.rel (%p197) target = $region36
        $region35: #{tpu_custom_call.1} parent=27 // pred_region
          %200 = dma.done %s193, 128
        $region36: #{tpu_custom_call.1} parent=27 // pred_fallthru
          _
        %s201 = sand.u32 %s44, 1
        %s202 = scalar_lea.sflag [#allocation3], %s201
        %s203 = sand.u32 %s44, 1
        %s204 = smul.addr %s203, 8
        %s205 = scalar_lea.vmem [#allocation2], %s204
        %p206 = pneg %p57
        %p207 = pneg %p54
        %s208 = sand.u32 %s72, 1
        %s209 = scalar_lea.sflag [#allocation6], %s208
        %s210 = sand.u32 %s72, 1
        %s211 = smul.addr %s210, 8
        %s212 = scalar_lea.vmem [#allocation5], %s211
        %p213 = pneg %p85
        %p214 = pneg %p82
        %p215 = pneg %p113
        %p216 = pneg %p110
        %s217 = sand.u32 %s100, 1
        %s218 = scalar_lea.sflag [#allocation4], %s217
        %s219 = sand.u32 %s100, 1
        %s220 = smul.addr %s219, 2
        %s221 = scalar_lea.vmem [#allocation7], %s220
        %v222 = vld [vmem:[%s187] sm:$0x3]
        %v223 = vld [vmem:[%s187 + $0x2] sm:$0x3]
        %v224 = vld [vmem:[%s187 + $0x4] sm:$0x3]
        %v225 = vld [vmem:[%s187 + $0x6] sm:$0x3]
        %v226 = vld [vmem:[%s196] sm:$0x3]
        %v227 = vld [vmem:[%s196 + $0x2] sm:$0x3]
        %v228 = vld [vmem:[%s196 + $0x4] sm:$0x3]
        %v229 = vld [vmem:[%s196 + $0x6] sm:$0x3]
        %v230 = vsub.f32 %v222, %v226
        %v231 = vsub.f32 %v223, %v227
        %v232 = vsub.f32 %v224, %v228
        %v233 = vsub.f32 %v225, %v229
        %v234 = vmul.f32 %v230, %v230
        %v235 = vmul.f32 %v231, %v231
        %v236 = vmul.f32 %v232, %v232
        %v237 = vmul.f32 %v233, %v233
        %vm238 = vcmask 1041408
        %v239 = vsel %vm238, %v234, 0.0
        %v240 = vsel %vm238, %v235, 0.0
        %v241 = vadd.f32 %v239, %v240
        %v242 = vsel %vm238, %v236, 0.0
        %v243 = vadd.f32 %v241, %v242
        %v244 = vsel %vm238, %v237, 0.0
        %v245 = vadd.f32 %v243, %v244
        %v246 = vmul.f32 %v245, 0.25
        %247 = vst [vmem:[%s221] sm:$0x3] %v246
        %s248 = sand.u32 %s100, 1
        %s249 = scalar_lea.sflag [#allocation4], %s248
        %s250 = sand.u32 %s100, 1
        %s251 = smul.addr %s250, 2
        %s252 = scalar_lea.vmem [#allocation7], %s251
        // Predicated region
        $region37: #{tpu_custom_call.1} parent=27 // pred_check
          %p253 = pneg %p110
        $region38: #{tpu_custom_call.1} parent=27 // pred_check_branch
          %255 = sbr.rel (%p253) target = $region40
        $region39: #{tpu_custom_call.1} parent=27 // pred_region
          %s257 = ssub.s32 32, 32
          %258 = vsyncadd %s249, %s257
          %s259 = sadd.s32 %s27, %s26
          %s260 = smul.addr %s259, 32
          %s261 = scalar_lea.hbm %s2, %s260
          %s263 = sshll.u32 %s252, 4
          %s264 = int_to_ptr.vmem [resolvable:$true] %s263
          %266 = dma.vmem_to_hbm [thread:$0]  %s264, 32, %s261, %s249
        $region40: #{tpu_custom_call.1} parent=27 // pred_fallthru
          _
      $region28: #{tpu_custom_call.1} parent=5 // pred_fallthru
        _
      %p267 = scmp.le.s32.totalorder 2, %s17
      // Predicated region
      $region41: #{tpu_custom_call.1} parent=5 // pred_check
        %p268 = pneg %p267
      $region42: #{tpu_custom_call.1} parent=5 // pred_check_branch
        %270 = sbr.rel (%p268) target = $region44
      $region43: #{tpu_custom_call.1} parent=5 // pred_region
        %s271 = ssub.s32 %s17, 2
        // Predicated region
        $region45: #{tpu_custom_call.1} parent=43 // pred_check
          %p272 = pneg %p116
        $region46: #{tpu_custom_call.1} parent=43 // pred_check_branch
          %274 = sbr.rel (%p272) target = $region48
        $region47: #{tpu_custom_call.1} parent=43 // pred_region
          %s275 = sand.u32 %s101, 1
          %s276 = scalar_lea.sflag [#allocation4], %s275
          %s277 = sand.u32 %s101, 1
          %s278 = smul.addr %s277, 2
          %s279 = scalar_lea.vmem [#allocation7], %s278
          %280 = dma.done %s276, 32
        $region48: #{tpu_custom_call.1} parent=43 // pred_fallthru
          _
      $region44: #{tpu_custom_call.1} parent=5 // pred_fallthru
        _
    $region6: #{tpu_custom_call.1} parent=1 // loop_footer
      %s21 = sadd.s32 1, %s17
    $region7: #{tpu_custom_call.1} parent=1 // loop_footer_branch
      %16 = sbr.rel target = $region3
    $region8: #{tpu_custom_call.1} parent=1 // loop_exit
      _
    %281 = vsyncpa [#allocation3], 1
    %s282 = scalar_lea.sflag [#allocation3], 1
    %283 = vsyncpa %s282, 1
    %284 = vsyncpa [#allocation6], 1
    %s285 = scalar_lea.sflag [#allocation6], 1
    %286 = vsyncpa %s285, 1
    %287 = vsyncpa [#allocation4], 1
    %s288 = scalar_lea.sflag [#allocation4], 1
    %289 = vsyncpa %s288, 1

</llo_original>
